<compile_context>
chip_gen: v7x
topology: tpu7x:2x2x1
jax: 0.10.0
libtpu: 0.0.40
codegen_flags: <defaults>
</compile_context>

<pallas_src>
import functools

import jax
import jax.numpy as jnp
from jax.experimental import pallas as pl
from jax.experimental.pallas import tpu as pltpu

# Deterministic "parameters" from Normalization2D.__init__
MEAN = 0.1307
SIGMA = 0.3081
INV_SIGMA = 1.0 / SIGMA        # one vmul per vreg instead of an f32 divide
ROW0_SHIFT = MEAN * INV_SIGMA  # constant-folded (x - mean)/sigma fix-up
# TODO(synk): multiplying by INV_SIGMA differs from PyTorch's true division by
# ~1 ulp (well inside the 1e-5 test tolerance); kept since the kernel is
# DMA-bound and the multiply is the documented fast path.

_LANE = 128
_TARGET_TILE_BYTES = 2 << 20     # ~2 MiB / block
_SINGLE_BLOCK_BYTES = 1 << 20    # below this: one block, one grid step


def _norm2d_kernel(x_ref, o_ref):
    """x_ref: [TB, TC] f32 tile of x  ->  o_ref: [TC, TB] tile of the [C, B] out."""
    # Bulk scale (VPU) + tile transpose (XLU) -> lane-dense [TC, TB] store.
    o_ref[...] = (x_ref[...] * INV_SIGMA).T

    # Batch row 0 (output column 0) also gets the -mean shift.  Only the first
    # batch tile contains it; reuse the scaled result and fold the constant.
    @pl.when(pl.program_id(0) == 0)
    def _():
        o_ref[:, 0:1] = o_ref[:, 0:1] - ROW0_SHIFT


def _round_down_lane(n):
    return max(_LANE, (n // _LANE) * _LANE)


def _round_up_lane(n):
    return ((n + _LANE - 1) // _LANE) * _LANE


def _choose_tiles(B, C, itemsize):
    """Pick (TB, TC).

    BlockSpec (8,128)-rule applied to BOTH the [TB, TC] input block and the
    transposed [TC, TB] output block means each of TB / TC must either be a
    multiple of 128 or equal to its full dimension.
    """
    total = B * C * itemsize
    if total <= _SINGLE_BLOCK_BYTES:
        return B, C                      # single block, single grid step

    if B >= 2 * _LANE:
        # Tile the batch axis in multiples of 128 (lane-dense [TC, TB] output
        # stores) and keep >= 2 batch blocks so v7x uses both TensorCores.
        tc = C
        if _LANE * C * itemsize > _TARGET_TILE_BYTES:
            tc = _round_down_lane(_TARGET_TILE_BYTES // (_LANE * itemsize))
        tb = _LANE
        while (2 * tb * tc * itemsize <= _TARGET_TILE_BYTES
               and 2 * tb <= B // 2):
            tb *= 2
        return tb, min(tc, C)

    # Small batch: keep B whole (it is the lane dim of the output; a full-dim
    # block is always legal) and tile C in multiples of 128, aiming for >= 2
    # C-blocks in the split regime (v7x megacore).
    tc = _round_down_lane(_TARGET_TILE_BYTES // max(1, B * itemsize))
    if C > _LANE:
        tc = min(tc, _round_up_lane(pl.cdiv(C, 2)))
    return B, min(tc, C)


@functools.partial(jax.jit, static_argnames=("input_size",))
def normalization2d(x, input_size=28):
    """x: [B, C] float32 with C == input_size**2.  Returns (1, H, W, B),
    matching `(x.index_add(0,[0],[-mean]*C) / sigma).t().view(1, H, W, B)`."""
    B, C = x.shape
    assert C == input_size * input_size, "C must equal input_size**2"

    TB, TC = _choose_tiles(B, C, x.dtype.itemsize)
    grid = (pl.cdiv(B, TB), pl.cdiv(C, TC))

    out_cb = pl.pallas_call(
        _norm2d_kernel,
        out_shape=jax.ShapeDtypeStruct((C, B), x.dtype),
        grid=grid,
        in_specs=[pl.BlockSpec((TB, TC), lambda i, j: (i, j))],
        out_specs=pl.BlockSpec((TC, TB), lambda i, j: (j, i)),
        compiler_params=pltpu.CompilerParams(
            dimension_semantics=("parallel", "parallel")),
    )(x)

    # [C, B] -> (1, H, W, B): free row-major view, no extra HBM pass.
    return out_cb.reshape(1, input_size, input_size, B)


def _reference(x, input_size):
    """Pure-JAX reference of the PyTorch forward (true division)."""
    y = x.at[0].add(-MEAN) / SIGMA
    return y.T.reshape(1, input_size, input_size, x.shape[0])


if __name__ == "__main__":
    key = jax.random.PRNGKey(0)
    k1, k2 = jax.random.split(key)

    # Small case (single-block path): batch=8, 16x16 spatial -> x: [8, 256].
    B1, S1 = 8, 16
    x1 = jax.random.normal(k1, (B1, S1 * S1), dtype=jnp.float32)
    out1 = jax.block_until_ready(normalization2d(x1, input_size=S1))
    ref1 = _reference(x1, S1)
    assert out1.shape == (1, S1, S1, B1)
    assert out1.dtype == jnp.float32
    assert jnp.allclose(out1, ref1, atol=1e-5, rtol=1e-5)

    # Larger case exercising the tiled (multi batch-block) path.
    B2, S2 = 2048, 16
    x2 = jax.random.normal(k2, (B2, S2 * S2), dtype=jnp.float32)
    out2 = jax.block_until_ready(normalization2d(x2, input_size=S2))
    ref2 = _reference(x2, S2)
    assert out2.shape == (1, S2, S2, B2)
    assert jnp.allclose(out2, ref2, atol=1e-5, rtol=1e-5)

    print("KERNEL_OK")
</pallas_src>

<mosaic_0001>
module attributes {stable_mosaic.version = 11 : i64} {
  func.func @_norm2d_kernel(%arg0: i32, %arg1: i32, %arg2: memref<8x256xf32, #tpu.memory_space<vmem>>, %arg3: memref<256x8xf32, #tpu.memory_space<vmem>>) attributes {dimension_semantics = [#tpu.dimension_semantics<parallel>, #tpu.dimension_semantics<parallel>], iteration_bounds = array<i64: 1, 1>, scalar_prefetch = 0 : i64, scratch_operands = 0 : i64, tpu.core_type = #tpu.core_type<tc>, window_params = [{transform_indices = @transform_0, window_bounds = array<i64: 8, 256>}, {transform_indices = @transform_1, window_bounds = array<i64: 256, 8>}]} {
    %c0 = arith.constant 0 : index
    %c0_0 = arith.constant 0 : index
    %0 = vector.load %arg2[%c0, %c0_0] : memref<8x256xf32, #tpu.memory_space<vmem>>, vector<8x256xf32>
    %cst = arith.constant 3.24569941 : f32
    %1 = vector.broadcast %cst : f32 to vector<8x256xf32>
    %2 = arith.mulf %0, %1 : vector<8x256xf32>
    %3 = tpu.transpose %2, [1, 0] : vector<8x256xf32> -> vector<256x8xf32>
    %c0_1 = arith.constant 0 : index
    %c0_2 = arith.constant 0 : index
    %4 = vector.load %arg3[%c0_1, %c0_2] : memref<256x8xf32, #tpu.memory_space<vmem>>, vector<256x8xf32>
    tpu.vector_store %arg3[%c0_1, %c0_2], %3 {strides = array<i32>} : memref<256x8xf32, #tpu.memory_space<vmem>>, vector<256x8xf32>,
    %c0_i32 = arith.constant 0 : i32
    %5 = arith.cmpi eq, %arg0, %c0_i32 : i32
    %6 = arith.extui %5 : i1 to i32
    %c0_i32_3 = arith.constant 0 : i32
    %7 = arith.cmpi ne, %6, %c0_i32_3 : i32
    scf.if %7 {
      %c0_4 = arith.constant 0 : index
      %c0_5 = arith.constant 0 : index
      %8 = vector.load %arg3[%c0_4, %c0_5] : memref<256x8xf32, #tpu.memory_space<vmem>>, vector<256x1xf32>
      %cst_6 = arith.constant 0.424212933 : f32
      %9 = vector.broadcast %cst_6 : f32 to vector<256x1xf32>
      %10 = arith.subf %8, %9 : vector<256x1xf32>
      %c0_7 = arith.constant 0 : index
      %c0_8 = arith.constant 0 : index
      %11 = vector.load %arg3[%c0_7, %c0_8] : memref<256x8xf32, #tpu.memory_space<vmem>>, vector<256x1xf32>
      tpu.vector_store %arg3[%c0_7, %c0_8], %10 {strides = array<i32>} : memref<256x8xf32, #tpu.memory_space<vmem>>, vector<256x1xf32>,
    } else {
    }
    return
  }
  func.func @transform_0(%arg0: i32, %arg1: i32) -> (i32, i32) {
    %c0_i32 = arith.constant 0 : i32
    return %arg0, %arg1 : i32, i32
  }
  func.func @transform_1(%arg0: i32, %arg1: i32) -> (i32, i32) {
    %c0_i32 = arith.constant 0 : i32
    return %arg1, %arg0 : i32, i32
  }
}

</mosaic_0001>

<llo_original>
// kernel: normalization2d.1
$region0: #{normalization2d.1}
  #allocation0 [shape = 'u32[]', space=smem, size = 0x4, offset = 0x4, fixed_abs, tag = 'smem constant byte address 0x4 - core index']
  #allocation1 [shape = 'u32[144,128]{1,0:T(1,128)}', space=vmem, size = 0x12000, scoped, tag = 'internal scratch']
  %s0 = inlined_call_operand.hbm [shape: f32[8,256], index: 0, kind: input, shape index: {}]
  %s1 = inlined_call_operand.vmem [shape: f32[256,8], index: 1, kind: output, shape index: {}]
  %s2 = sld [smem:[#allocation0]]
  $region22: #{normalization2d.1} parent=0
    _
  %s4 = ssub.s32 1, %s2
  %s5 = scalar_select 0, %s4, %s2
  $region1: #{normalization2d.1} parent=0
    #allocation2 [shape = 'u8[8192]{0}', space=vmem, size = 0x2000, scoped, tag = 'input window, operand 0, single buffered']
    #allocation3 [shape = 's32[1]{0}', space=sflag, size = 0x4, scoped, tag = 'scoped memory for normalization2d.1']
    %6 = vsyncpa [#allocation3], 0
    // Predicated region
    $region2: #{normalization2d.1} parent=1 // pred_check
      _
    $region3: #{normalization2d.1} parent=1 // pred_check_branch
      %8 = sbr.rel (0) target = $region5
    $region4: #{normalization2d.1} parent=1 // pred_region
      %s10 = ssub.s32 256, 256
      %11 = vsyncadd [#allocation3], %s10
      %s13 = sshll.u32 [#allocation2], 4
      %s14 = int_to_ptr.vmem [resolvable:$true] %s13
      %16 = dma.hbm_to_vmem [thread:$0]  %s0, 256, %s14, [#allocation3]
    $region5: #{normalization2d.1} parent=1 // pred_fallthru
      _
    // Predicated region
    $region6: #{normalization2d.1} parent=1 // pred_check
      _
    $region7: #{normalization2d.1} parent=1 // pred_check_branch
      %18 = sbr.rel (0) target = $region9
    $region8: #{normalization2d.1} parent=1 // pred_region
      %19 = dma.done [#allocation3], 256
    $region9: #{normalization2d.1} parent=1 // pred_fallthru
      _
    %v20 = vld [vmem:[#allocation2] sm:$0xff]
    %v21 = vld [vmem:[#allocation2 + $0x8] sm:$0xff]
    %v22 = vmul.f32 %v20, 3.2456994
    %v23 = vmul.f32 %v21, 3.2456994
    %24 = vxpose.xlu0.b32.start [1/16] %v22, 128
    %25 = vxpose.xlu0.b32.cont [2/16] 0.0, 128
    %26 = vxpose.xlu0.b32.cont [3/16] 0.0, 128
    %27 = vxpose.xlu0.b32.cont [4/16] 0.0, 128
    %28 = vxpose.xlu0.b32.cont [5/16] 0.0, 128
    %29 = vxpose.xlu0.b32.cont [6/16] 0.0, 128
    %30 = vxpose.xlu0.b32.cont [7/16] 0.0, 128
    %31 = vxpose.xlu0.b32.cont [8/16] 0.0, 128
    %32 = vxpose.xlu0.b32.cont [9/16] 0.0, 128
    %33 = vxpose.xlu0.b32.cont [10/16] 0.0, 128
    %34 = vxpose.xlu0.b32.cont [11/16] 0.0, 128
    %35 = vxpose.xlu0.b32.cont [12/16] 0.0, 128
    %36 = vxpose.xlu0.b32.cont [13/16] 0.0, 128
    %37 = vxpose.xlu0.b32.cont [14/16] 0.0, 128
    %38 = vxpose.xlu0.b32.cont [15/16] 0.0, 128
    %39 = vxpose.xlu0.b32.end [16/16] 0.0, 128
    %v40 = vpop.trf.xlu0
    %v41 = vpop.trf.xlu0
    %v42 = vpop.trf.xlu0
    %v43 = vpop.trf.xlu0
    %v44 = vpop.trf.xlu0
    %v45 = vpop.trf.xlu0
    %v46 = vpop.trf.xlu0
    %v47 = vpop.trf.xlu0
    %v48 = vpop.trf.xlu0
    %v49 = vpop.trf.xlu0
    %v50 = vpop.trf.xlu0
    %v51 = vpop.trf.xlu0
    %v52 = vpop.trf.xlu0
    %v53 = vpop.trf.xlu0
    %v54 = vpop.trf.xlu0
    %v55 = vpop.trf.xlu0
    %56 = vxpose.xlu0.b32.start [1/16] %v23, 128
    %57 = vxpose.xlu0.b32.cont [2/16] 0.0, 128
    %58 = vxpose.xlu0.b32.cont [3/16] 0.0, 128
    %59 = vxpose.xlu0.b32.cont [4/16] 0.0, 128
    %60 = vxpose.xlu0.b32.cont [5/16] 0.0, 128
    %61 = vxpose.xlu0.b32.cont [6/16] 0.0, 128
    %62 = vxpose.xlu0.b32.cont [7/16] 0.0, 128
    %63 = vxpose.xlu0.b32.cont [8/16] 0.0, 128
    %64 = vxpose.xlu0.b32.cont [9/16] 0.0, 128
    %65 = vxpose.xlu0.b32.cont [10/16] 0.0, 128
    %66 = vxpose.xlu0.b32.cont [11/16] 0.0, 128
    %67 = vxpose.xlu0.b32.cont [12/16] 0.0, 128
    %68 = vxpose.xlu0.b32.cont [13/16] 0.0, 128
    %69 = vxpose.xlu0.b32.cont [14/16] 0.0, 128
    %70 = vxpose.xlu0.b32.cont [15/16] 0.0, 128
    %71 = vxpose.xlu0.b32.end [16/16] 0.0, 128
    %v72 = vpop.trf.xlu0
    %v73 = vpop.trf.xlu0
    %v74 = vpop.trf.xlu0
    %v75 = vpop.trf.xlu0
    %v76 = vpop.trf.xlu0
    %v77 = vpop.trf.xlu0
    %v78 = vpop.trf.xlu0
    %v79 = vpop.trf.xlu0
    %v80 = vpop.trf.xlu0
    %v81 = vpop.trf.xlu0
    %v82 = vpop.trf.xlu0
    %v83 = vpop.trf.xlu0
    %v84 = vpop.trf.xlu0
    %v85 = vpop.trf.xlu0
    %v86 = vpop.trf.xlu0
    %v87 = vpop.trf.xlu0
    %vm88 = vcmask 64512
    %89 = vst.msk [vmem:[%s1] sm:$0xff] %vm88, %v40
    %90 = vst.msk [vmem:[%s1 + $0x8] sm:$0xff] %vm88, %v41
    %91 = vst.msk [vmem:[%s1 + $0x10] sm:$0xff] %vm88, %v42
    %92 = vst.msk [vmem:[%s1 + $0x18] sm:$0xff] %vm88, %v43
    %93 = vst.msk [vmem:[%s1 + $0x20] sm:$0xff] %vm88, %v44
    %94 = vst.msk [vmem:[%s1 + $0x28] sm:$0xff] %vm88, %v45
    %95 = vst.msk [vmem:[%s1 + $0x30] sm:$0xff] %vm88, %v46
    %96 = vst.msk [vmem:[%s1 + $0x38] sm:$0xff] %vm88, %v47
    %97 = vst.msk [vmem:[%s1 + $0x40] sm:$0xff] %vm88, %v48
    %98 = vst.msk [vmem:[%s1 + $0x48] sm:$0xff] %vm88, %v49
    %99 = vst.msk [vmem:[%s1 + $0x50] sm:$0xff] %vm88, %v50
    %100 = vst.msk [vmem:[%s1 + $0x58] sm:$0xff] %vm88, %v51
    %101 = vst.msk [vmem:[%s1 + $0x60] sm:$0xff] %vm88, %v52
    %102 = vst.msk [vmem:[%s1 + $0x68] sm:$0xff] %vm88, %v53
    %103 = vst.msk [vmem:[%s1 + $0x70] sm:$0xff] %vm88, %v54
    %104 = vst.msk [vmem:[%s1 + $0x78] sm:$0xff] %vm88, %v55
    %105 = vst.msk [vmem:[%s1 + $0x80] sm:$0xff] %vm88, %v72
    %106 = vst.msk [vmem:[%s1 + $0x88] sm:$0xff] %vm88, %v73
    %107 = vst.msk [vmem:[%s1 + $0x90] sm:$0xff] %vm88, %v74
    %108 = vst.msk [vmem:[%s1 + $0x98] sm:$0xff] %vm88, %v75
    %109 = vst.msk [vmem:[%s1 + $0xa0] sm:$0xff] %vm88, %v76
    %110 = vst.msk [vmem:[%s1 + $0xa8] sm:$0xff] %vm88, %v77
    %111 = vst.msk [vmem:[%s1 + $0xb0] sm:$0xff] %vm88, %v78
    %112 = vst.msk [vmem:[%s1 + $0xb8] sm:$0xff] %vm88, %v79
    %113 = vst.msk [vmem:[%s1 + $0xc0] sm:$0xff] %vm88, %v80
    %114 = vst.msk [vmem:[%s1 + $0xc8] sm:$0xff] %vm88, %v81
    %115 = vst.msk [vmem:[%s1 + $0xd0] sm:$0xff] %vm88, %v82
    %116 = vst.msk [vmem:[%s1 + $0xd8] sm:$0xff] %vm88, %v83
    %117 = vst.msk [vmem:[%s1 + $0xe0] sm:$0xff] %vm88, %v84
    %118 = vst.msk [vmem:[%s1 + $0xe8] sm:$0xff] %vm88, %v85
    %119 = vst.msk [vmem:[%s1 + $0xf0] sm:$0xff] %vm88, %v86
    %120 = vst.msk [vmem:[%s1 + $0xf8] sm:$0xff] %vm88, %v87
    %p121 = scmp.eq.s32.totalorder 0, 0
    // Predicated region
    $region10: #{normalization2d.1} parent=1 // pred_check
      %p122 = pneg %p121
    $region11: #{normalization2d.1} parent=1 // pred_check_branch
      %124 = sbr.rel (%p122) target = $region13
    $region12: #{normalization2d.1} parent=1 // pred_region
      %v125 = vld [vmem:[%s1] sm:$0xff]
      %v126 = vld [vmem:[%s1 + $0x8] sm:$0xff]
      %v127 = vld [vmem:[%s1 + $0x10] sm:$0xff]
      %v128 = vld [vmem:[%s1 + $0x18] sm:$0xff]
      %v129 = vld [vmem:[%s1 + $0x20] sm:$0xff]
      %v130 = vld [vmem:[%s1 + $0x28] sm:$0xff]
      %v131 = vld [vmem:[%s1 + $0x30] sm:$0xff]
      %v132 = vld [vmem:[%s1 + $0x38] sm:$0xff]
      %v133 = vld [vmem:[%s1 + $0x40] sm:$0xff]
      %v134 = vld [vmem:[%s1 + $0x48] sm:$0xff]
      %v135 = vld [vmem:[%s1 + $0x50] sm:$0xff]
      %v136 = vld [vmem:[%s1 + $0x58] sm:$0xff]
      %v137 = vld [vmem:[%s1 + $0x60] sm:$0xff]
      %v138 = vld [vmem:[%s1 + $0x68] sm:$0xff]
      %v139 = vld [vmem:[%s1 + $0x70] sm:$0xff]
      %v140 = vld [vmem:[%s1 + $0x78] sm:$0xff]
      %v141 = vld [vmem:[%s1 + $0x80] sm:$0xff]
      %v142 = vld [vmem:[%s1 + $0x88] sm:$0xff]
      %v143 = vld [vmem:[%s1 + $0x90] sm:$0xff]
      %v144 = vld [vmem:[%s1 + $0x98] sm:$0xff]
      %v145 = vld [vmem:[%s1 + $0xa0] sm:$0xff]
      %v146 = vld [vmem:[%s1 + $0xa8] sm:$0xff]
      %v147 = vld [vmem:[%s1 + $0xb0] sm:$0xff]
      %v148 = vld [vmem:[%s1 + $0xb8] sm:$0xff]
      %v149 = vld [vmem:[%s1 + $0xc0] sm:$0xff]
      %v150 = vld [vmem:[%s1 + $0xc8] sm:$0xff]
      %v151 = vld [vmem:[%s1 + $0xd0] sm:$0xff]
      %v152 = vld [vmem:[%s1 + $0xd8] sm:$0xff]
      %v153 = vld [vmem:[%s1 + $0xe0] sm:$0xff]
      %v154 = vld [vmem:[%s1 + $0xe8] sm:$0xff]
      %v155 = vld [vmem:[%s1 + $0xf0] sm:$0xff]
      %v156 = vld [vmem:[%s1 + $0xf8] sm:$0xff]
      %v157 = vsub.f32 %v125, 0.42421293
      %v158 = vsub.f32 %v126, 0.42421293
      %v159 = vsub.f32 %v127, 0.42421293
      %v160 = vsub.f32 %v128, 0.42421293
      %v161 = vsub.f32 %v129, 0.42421293
      %v162 = vsub.f32 %v130, 0.42421293
      %v163 = vsub.f32 %v131, 0.42421293
      %v164 = vsub.f32 %v132, 0.42421293
      %v165 = vsub.f32 %v133, 0.42421293
      %v166 = vsub.f32 %v134, 0.42421293
      %v167 = vsub.f32 %v135, 0.42421293
      %v168 = vsub.f32 %v136, 0.42421293
      %v169 = vsub.f32 %v137, 0.42421293
      %v170 = vsub.f32 %v138, 0.42421293
      %v171 = vsub.f32 %v139, 0.42421293
      %v172 = vsub.f32 %v140, 0.42421293
      %v173 = vsub.f32 %v141, 0.42421293
      %v174 = vsub.f32 %v142, 0.42421293
      %v175 = vsub.f32 %v143, 0.42421293
      %v176 = vsub.f32 %v144, 0.42421293
      %v177 = vsub.f32 %v145, 0.42421293
      %v178 = vsub.f32 %v146, 0.42421293
      %v179 = vsub.f32 %v147, 0.42421293
      %v180 = vsub.f32 %v148, 0.42421293
      %v181 = vsub.f32 %v149, 0.42421293
      %v182 = vsub.f32 %v150, 0.42421293
      %v183 = vsub.f32 %v151, 0.42421293
      %v184 = vsub.f32 %v152, 0.42421293
      %v185 = vsub.f32 %v153, 0.42421293
      %v186 = vsub.f32 %v154, 0.42421293
      %v187 = vsub.f32 %v155, 0.42421293
      %v188 = vsub.f32 %v156, 0.42421293
      %vm189 = vcmask 7168
      %190 = vst.msk [vmem:[%s1] sm:$0xff] %vm189, %v157
      %191 = vst.msk [vmem:[%s1 + $0x8] sm:$0xff] %vm189, %v158
      %192 = vst.msk [vmem:[%s1 + $0x10] sm:$0xff] %vm189, %v159
      %193 = vst.msk [vmem:[%s1 + $0x18] sm:$0xff] %vm189, %v160
      %194 = vst.msk [vmem:[%s1 + $0x20] sm:$0xff] %vm189, %v161
      %195 = vst.msk [vmem:[%s1 + $0x28] sm:$0xff] %vm189, %v162
      %196 = vst.msk [vmem:[%s1 + $0x30] sm:$0xff] %vm189, %v163
      %197 = vst.msk [vmem:[%s1 + $0x38] sm:$0xff] %vm189, %v164
      %198 = vst.msk [vmem:[%s1 + $0x40] sm:$0xff] %vm189, %v165
      %199 = vst.msk [vmem:[%s1 + $0x48] sm:$0xff] %vm189, %v166
      %200 = vst.msk [vmem:[%s1 + $0x50] sm:$0xff] %vm189, %v167
      %201 = vst.msk [vmem:[%s1 + $0x58] sm:$0xff] %vm189, %v168
      %202 = vst.msk [vmem:[%s1 + $0x60] sm:$0xff] %vm189, %v169
      %203 = vst.msk [vmem:[%s1 + $0x68] sm:$0xff] %vm189, %v170
      %204 = vst.msk [vmem:[%s1 + $0x70] sm:$0xff] %vm189, %v171
      %205 = vst.msk [vmem:[%s1 + $0x78] sm:$0xff] %vm189, %v172
      %206 = vst.msk [vmem:[%s1 + $0x80] sm:$0xff] %vm189, %v173
      %207 = vst.msk [vmem:[%s1 + $0x88] sm:$0xff] %vm189, %v174
      %208 = vst.msk [vmem:[%s1 + $0x90] sm:$0xff] %vm189, %v175
      %209 = vst.msk [vmem:[%s1 + $0x98] sm:$0xff] %vm189, %v176
      %210 = vst.msk [vmem:[%s1 + $0xa0] sm:$0xff] %vm189, %v177
      %211 = vst.msk [vmem:[%s1 + $0xa8] sm:$0xff] %vm189, %v178
      %212 = vst.msk [vmem:[%s1 + $0xb0] sm:$0xff] %vm189, %v179
      %213 = vst.msk [vmem:[%s1 + $0xb8] sm:$0xff] %vm189, %v180
      %214 = vst.msk [vmem:[%s1 + $0xc0] sm:$0xff] %vm189, %v181
      %215 = vst.msk [vmem:[%s1 + $0xc8] sm:$0xff] %vm189, %v182
      %216 = vst.msk [vmem:[%s1 + $0xd0] sm:$0xff] %vm189, %v183
      %217 = vst.msk [vmem:[%s1 + $0xd8] sm:$0xff] %vm189, %v184
      %218 = vst.msk [vmem:[%s1 + $0xe0] sm:$0xff] %vm189, %v185
      %219 = vst.msk [vmem:[%s1 + $0xe8] sm:$0xff] %vm189, %v186
      %220 = vst.msk [vmem:[%s1 + $0xf0] sm:$0xff] %vm189, %v187
      %221 = vst.msk [vmem:[%s1 + $0xf8] sm:$0xff] %vm189, %v188
    $region13: #{normalization2d.1} parent=1 // pred_fallthru
      _
    // Predicated region
    $region14: #{normalization2d.1} parent=1 // pred_check
      _
    $region15: #{normalization2d.1} parent=1 // pred_check_branch
      %223 = sbr.rel (0) target = $region17
    $region16: #{normalization2d.1} parent=1 // pred_region
      _
    $region17: #{normalization2d.1} parent=1 // pred_fallthru
      _
    // Predicated region
    $region18: #{normalization2d.1} parent=1 // pred_check
      _
    $region19: #{normalization2d.1} parent=1 // pred_check_branch
      %225 = sbr.rel (0) target = $region21
    $region20: #{normalization2d.1} parent=1 // pred_region
      _
    $region21: #{normalization2d.1} parent=1 // pred_fallthru
      _
    %226 = vsyncpa [#allocation3], 1

</llo_original>
